<compile_context>
chip_gen: v6e
topology: v6e:2x2x1
jax: 0.10.0
libtpu: 0.0.40
codegen_flags: <defaults>
</compile_context>

<pallas_src>
import jax
import jax.numpy as jnp
from jax.experimental import pallas as pl
from jax.experimental.pallas import tpu as pltpu


def _round_up(n, m):
    return ((n + m - 1) // m) * m


def _policy_kernel(x_ref, w_ref, b_ref, out_ref):
    # x_ref:  (TB, K0)     bf16   observations (K0 = obs_dim rounded up to 16)
    # w_ref:  (3, P, P)    bf16   [w1 | w2 | fused-head], zero-padded
    # b_ref:  (3, 1, P)    f32    [b1 | b2 | fused-head bias], zero-padded
    # out_ref:(TB, P)             cols [0:act) = mu, [act:2*act) = logstd
    k0 = x_ref.shape[1]
    x = x_ref[...]

    # encoder: Linear -> ReLU -> Linear -> ReLU (bf16 MXU matmuls, f32 accum).
    # Only the first k0 (16-aligned) rows of the first weight slab are live.
    h1 = jnp.dot(x, w_ref[0, :k0, :], preferred_element_type=jnp.float32) + b_ref[0]
    h1 = jnp.maximum(h1, 0.0)
    h2 = jnp.dot(h1.astype(jnp.bfloat16), w_ref[1],
                 preferred_element_type=jnp.float32) + b_ref[1]
    h2 = jnp.maximum(h2, 0.0)

    # decoder: single fused head producing [mu | logstd | zero-pad]
    out = jnp.dot(h2.astype(jnp.bfloat16), w_ref[2],
                  preferred_element_type=jnp.float32) + b_ref[2]
    out_ref[...] = out.astype(out_ref.dtype)


def pack_params(p, obs_dim, hidden, act_dim):
    """Zero-pad to a common 128-lane width, fuse decoder heads, stack into one
    bf16 weight tensor and one f32 bias tensor (3 operands -> 3 resident DMAs)."""
    P = max(_round_up(obs_dim, 128), _round_up(hidden, 128),
            _round_up(2 * act_dim, 128))
    K0 = _round_up(obs_dim, 16)   # bf16 sublane packing of the obs contraction dim

    def pad_w(w):
        return jnp.zeros((P, P), jnp.float32).at[:w.shape[0], :w.shape[1]].set(w)

    def pad_b(b):  # b is (1, n)
        return jnp.zeros((1, P), jnp.float32).at[:, :b.shape[1]].set(b)

    w_head = jnp.concatenate([p["wmu"], p["wls"]], axis=1)   # (hidden, 2*act)
    b_head = jnp.concatenate([p["bmu"], p["bls"]], axis=1)   # (1, 2*act)

    w_packed = jnp.stack(
        [pad_w(p["w1"]), pad_w(p["w2"]), pad_w(w_head)]).astype(jnp.bfloat16)
    b_packed = jnp.stack([pad_b(p["b1"]), pad_b(p["b2"]), pad_b(b_head)])
    return dict(w=w_packed, b=b_packed, P=P, K0=K0,
                obs_dim=obs_dim, act_dim=act_dim)


def isotropic_gaussian_policy_forward(x, packed, *, max_tile_b=2048,
                                      out_dtype=jnp.float32,
                                      split_for_megacore=True):
    """Fused forward. x: (B, obs_dim) f32. Returns (mu, logstd), each (B, act_dim)."""
    B, obs_dim = x.shape
    P = packed["P"]
    K0 = packed["K0"]
    act_dim = packed["act_dim"]
    assert obs_dim == packed["obs_dim"]

    # Balanced batch tiling: near-equal tiles, multiples of 16 rows. Tile size
    # is bounded by per-grid-step overhead, not VMEM (a double-buffered
    # (2048, K0) bf16 input + (2048, 128) output tile is only a few MiB).
    num_tiles = pl.cdiv(B, max_tile_b)
    # Ensure >=2 programs for big batches so v7x's two TensorCores both work
    # (harmless extra ~0.35us step on single-core v5e/v6e).
    if split_for_megacore and num_tiles < 2 and B >= 512:
        num_tiles = 2
    tb = _round_up(pl.cdiv(B, num_tiles), 16)
    b_pad = tb * num_tiles

    # No 128-lane padding of observations; only pad batch rows / 16-align K.
    if b_pad == B and K0 == obs_dim:
        x_p = x.astype(jnp.bfloat16)
    else:
        x_p = jnp.zeros((b_pad, K0), jnp.bfloat16).at[:B, :obs_dim].set(
            x.astype(jnp.bfloat16))

    out_itemsize = jnp.dtype(out_dtype).itemsize
    cost = pl.CostEstimate(
        flops=2 * b_pad * P * (K0 + 2 * P),
        transcendentals=0,
        bytes_accessed=int(x_p.size * 2 + b_pad * P * out_itemsize
                           + packed["w"].size * 2 + packed["b"].size * 4))

    def _resident_spec(shape, buffered):
        index_map = lambda i: (0,) * len(shape)
        if buffered:
            # Constant index_map -> never re-fetched; single VMEM buffer.
            return pl.BlockSpec(shape, index_map,
                                pipeline_mode=pl.Buffered(buffer_count=1))
        return pl.BlockSpec(shape, index_map)

    def _run(buffered):
        return pl.pallas_call(
            _policy_kernel,
            out_shape=jax.ShapeDtypeStruct((b_pad, P), out_dtype),
            grid=(num_tiles,),
            in_specs=[
                pl.BlockSpec((tb, K0), lambda i: (i, 0)),   # activations: tiled, unpadded lanes
                _resident_spec((3, P, P), buffered),        # weights: resident
                _resident_spec((3, 1, P), buffered),        # biases: resident
            ],
            out_specs=pl.BlockSpec((tb, P), lambda i: (i, 0)),
            compiler_params=pltpu.CompilerParams(
                dimension_semantics=("parallel",)),
            cost_estimate=cost,
        )(x_p, packed["w"], packed["b"])

    try:
        out = _run(buffered=True)
    except Exception:
        # Fallback if this jax build rejects single-buffered pipeline_mode;
        # identical semantics, just double-buffers the ~100 KiB weight slab.
        out = _run(buffered=False)

    # Single slice over the padded slab, then split into the two heads.
    head = out[:B, :2 * act_dim].astype(jnp.float32)
    mu, logstd = jnp.split(head, 2, axis=1)
    # TODO(synk): the base class returns logstd unclamped; if a concrete
    # subclass bounds log-std, clamp inside the kernel (free VPU op).
    return mu, logstd


def init_params(key, obs_dim, hidden, act_dim):
    """Deterministic synthetic init (PyTorch Linear shapes, stored (in, out))."""
    ks = jax.random.split(key, 4)

    def linear(k, fan_in, fan_out):
        bound = 1.0 / jnp.sqrt(fan_in)
        kw, kb = jax.random.split(k)
        w = jax.random.uniform(kw, (fan_in, fan_out), jnp.float32, -bound, bound)
        b = jax.random.uniform(kb, (1, fan_out), jnp.float32, -bound, bound)
        return w, b

    w1, b1 = linear(ks[0], obs_dim, hidden)
    w2, b2 = linear(ks[1], hidden, hidden)
    wmu, bmu = linear(ks[2], hidden, act_dim)
    wls, bls = linear(ks[3], hidden, act_dim)
    return dict(w1=w1, b1=b1, w2=w2, b2=b2, wmu=wmu, bmu=bmu, wls=wls, bls=bls)


def reference_forward(x, p):
    """Pure-JAX reference with identical bf16-input / f32-accumulate numerics."""
    c = lambda a: a.astype(jnp.bfloat16)
    h1 = jnp.maximum(
        jnp.dot(c(x), c(p["w1"]), preferred_element_type=jnp.float32) + p["b1"], 0.0)
    h2 = jnp.maximum(
        jnp.dot(c(h1), c(p["w2"]), preferred_element_type=jnp.float32) + p["b2"], 0.0)
    mu = jnp.dot(c(h2), c(p["wmu"]), preferred_element_type=jnp.float32) + p["bmu"]
    ls = jnp.dot(c(h2), c(p["wls"]), preferred_element_type=jnp.float32) + p["bls"]
    return mu, ls


if __name__ == "__main__":
    key = jax.random.PRNGKey(0)
    k_x, k_p = jax.random.split(key)

    B, OBS, HID, ACT = 8, 32, 64, 8
    x = jax.random.normal(k_x, (B, OBS), dtype=jnp.float32)
    params = init_params(k_p, OBS, HID, ACT)
    packed = pack_params(params, OBS, HID, ACT)

    mu, logstd = isotropic_gaussian_policy_forward(x, packed)
    jax.block_until_ready((mu, logstd))

    mu_ref, ls_ref = reference_forward(x, params)
    assert mu.shape == (B, ACT) and logstd.shape == (B, ACT)
    assert jnp.allclose(mu, mu_ref, atol=1e-3, rtol=1e-3), \
        float(jnp.max(jnp.abs(mu - mu_ref)))
    assert jnp.allclose(logstd, ls_ref, atol=1e-3, rtol=1e-3), \
        float(jnp.max(jnp.abs(logstd - ls_ref)))

    # TODO(synk): SphericalMultivariateNormal construction, sampling, log_prob
    # and entropy are stochastic / host-side glue and stay outside the kernel.

    print("KERNEL_OK")
</pallas_src>

<mosaic_0001>
module attributes {stable_mosaic.version = 11 : i64} {
  func.func @_policy_kernel(%arg0: i32, %arg1: memref<16x32xbf16, #tpu.memory_space<vmem>>, %arg2: memref<3x128x128xbf16, #tpu.memory_space<vmem>>, %arg3: memref<3x1x128xf32, #tpu.memory_space<vmem>>, %arg4: memref<16x128xf32, #tpu.memory_space<vmem>>) attributes {dimension_semantics = [#tpu.dimension_semantics<parallel>], iteration_bounds = array<i64: 1>, scalar_prefetch = 0 : i64, scratch_operands = 0 : i64, tpu.core_type = #tpu.core_type<tc>, window_params = [{transform_indices = @transform_0, window_bounds = array<i64: 16, 32>}, {pipeline_mode = #tpu.pipeline_mode<synchronous>, transform_indices = @transform_1, window_bounds = array<i64: 3, 128, 128>}, {pipeline_mode = #tpu.pipeline_mode<synchronous>, transform_indices = @transform_2, window_bounds = array<i64: 3, 1, 128>}, {transform_indices = @transform_3, window_bounds = array<i64: 16, 128>}]} {
    %c0 = arith.constant 0 : index
    %c0_0 = arith.constant 0 : index
    %0 = vector.load %arg1[%c0, %c0_0] : memref<16x32xbf16, #tpu.memory_space<vmem>>, vector<16x32xbf16>
    %c0_1 = arith.constant 0 : index
    %c0_2 = arith.constant 0 : index
    %c0_3 = arith.constant 0 : index
    %1 = vector.load %arg2[%c0_1, %c0_2, %c0_3] : memref<3x128x128xbf16, #tpu.memory_space<vmem>>, vector<1x32x128xbf16>
    %2 = vector.shape_cast %1 : vector<1x32x128xbf16> to vector<32x128xbf16>
    %cst = arith.constant dense<0.000000e+00> : vector<16x128xf32>
    %3 = tpu.matmul %0, %2, %cst {dimension_numbers = #tpu.dot_dimension_numbers<[1], [0], [0], [1], [0, 0, 1, 1], [], []>} : vector<16x32xbf16>, vector<32x128xbf16>, vector<16x128xf32> -> vector<16x128xf32>
    %c0_4 = arith.constant 0 : index
    %c0_5 = arith.constant 0 : index
    %c0_6 = arith.constant 0 : index
    %4 = vector.load %arg3[%c0_4, %c0_5, %c0_6] : memref<3x1x128xf32, #tpu.memory_space<vmem>>, vector<1x1x128xf32>
    %5 = vector.shape_cast %4 : vector<1x1x128xf32> to vector<1x128xf32>
    %6 = vector.broadcast %5 : vector<1x128xf32> to vector<16x128xf32>
    %7 = arith.addf %3, %6 : vector<16x128xf32>
    %cst_7 = arith.constant 0.000000e+00 : f32
    %8 = vector.broadcast %cst_7 : f32 to vector<16x128xf32>
    %9 = arith.maximumf %7, %8 : vector<16x128xf32>
    %10 = arith.truncf %9 : vector<16x128xf32> to vector<16x128xbf16>
    %c1 = arith.constant 1 : index
    %c0_8 = arith.constant 0 : index
    %c0_9 = arith.constant 0 : index
    %11 = vector.load %arg2[%c1, %c0_8, %c0_9] : memref<3x128x128xbf16, #tpu.memory_space<vmem>>, vector<1x128x128xbf16>
    %12 = vector.shape_cast %11 : vector<1x128x128xbf16> to vector<128x128xbf16>
    %cst_10 = arith.constant dense<0.000000e+00> : vector<16x128xf32>
    %13 = tpu.matmul %10, %12, %cst_10 {dimension_numbers = #tpu.dot_dimension_numbers<[1], [0], [0], [1], [0, 0, 1, 1], [], []>} : vector<16x128xbf16>, vector<128x128xbf16>, vector<16x128xf32> -> vector<16x128xf32>
    %c1_11 = arith.constant 1 : index
    %c0_12 = arith.constant 0 : index
    %c0_13 = arith.constant 0 : index
    %14 = vector.load %arg3[%c1_11, %c0_12, %c0_13] : memref<3x1x128xf32, #tpu.memory_space<vmem>>, vector<1x1x128xf32>
    %15 = vector.shape_cast %14 : vector<1x1x128xf32> to vector<1x128xf32>
    %16 = vector.broadcast %15 : vector<1x128xf32> to vector<16x128xf32>
    %17 = arith.addf %13, %16 : vector<16x128xf32>
    %cst_14 = arith.constant 0.000000e+00 : f32
    %18 = vector.broadcast %cst_14 : f32 to vector<16x128xf32>
    %19 = arith.maximumf %17, %18 : vector<16x128xf32>
    %20 = arith.truncf %19 : vector<16x128xf32> to vector<16x128xbf16>
    %c2 = arith.constant 2 : index
    %c0_15 = arith.constant 0 : index
    %c0_16 = arith.constant 0 : index
    %21 = vector.load %arg2[%c2, %c0_15, %c0_16] : memref<3x128x128xbf16, #tpu.memory_space<vmem>>, vector<1x128x128xbf16>
    %22 = vector.shape_cast %21 : vector<1x128x128xbf16> to vector<128x128xbf16>
    %cst_17 = arith.constant dense<0.000000e+00> : vector<16x128xf32>
    %23 = tpu.matmul %20, %22, %cst_17 {dimension_numbers = #tpu.dot_dimension_numbers<[1], [0], [0], [1], [0, 0, 1, 1], [], []>} : vector<16x128xbf16>, vector<128x128xbf16>, vector<16x128xf32> -> vector<16x128xf32>
    %c2_18 = arith.constant 2 : index
    %c0_19 = arith.constant 0 : index
    %c0_20 = arith.constant 0 : index
    %24 = vector.load %arg3[%c2_18, %c0_19, %c0_20] : memref<3x1x128xf32, #tpu.memory_space<vmem>>, vector<1x1x128xf32>
    %25 = vector.shape_cast %24 : vector<1x1x128xf32> to vector<1x128xf32>
    %26 = vector.broadcast %25 : vector<1x128xf32> to vector<16x128xf32>
    %27 = arith.addf %23, %26 : vector<16x128xf32>
    %c0_21 = arith.constant 0 : index
    %c0_22 = arith.constant 0 : index
    %28 = vector.load %arg4[%c0_21, %c0_22] : memref<16x128xf32, #tpu.memory_space<vmem>>, vector<16x128xf32>
    tpu.vector_store %arg4[%c0_21, %c0_22], %27 {strides = array<i32>} : memref<16x128xf32, #tpu.memory_space<vmem>>, vector<16x128xf32>,
    return
  }
  func.func @transform_0(%arg0: i32) -> (i32, i32) {
    %c0_i32 = arith.constant 0 : i32
    %c0_i32_0 = arith.constant 0 : i32
    return %arg0, %c0_i32 : i32, i32
  }
  func.func @transform_1(%arg0: i32) -> (i32, i32, i32) {
    %c0_i32 = arith.constant 0 : i32
    %c0_i32_0 = arith.constant 0 : i32
    %c0_i32_1 = arith.constant 0 : i32
    %c0_i32_2 = arith.constant 0 : i32
    return %c0_i32, %c0_i32_0, %c0_i32_1 : i32, i32, i32
  }
  func.func @transform_2(%arg0: i32) -> (i32, i32, i32) {
    %c0_i32 = arith.constant 0 : i32
    %c0_i32_0 = arith.constant 0 : i32
    %c0_i32_1 = arith.constant 0 : i32
    %c0_i32_2 = arith.constant 0 : i32
    return %c0_i32, %c0_i32_0, %c0_i32_1 : i32, i32, i32
  }
  func.func @transform_3(%arg0: i32) -> (i32, i32) {
    %c0_i32 = arith.constant 0 : i32
    %c0_i32_0 = arith.constant 0 : i32
    return %arg0, %c0_i32 : i32, i32
  }
}

module attributes {stable_mosaic.version = 11 : i64} {
  func.func @_policy_kernel(%arg0: i32, %arg1: memref<16x32xbf16, #tpu.memory_space<vmem>>, %arg2: memref<3x128x128xbf16, #tpu.memory_space<vmem>>, %arg3: memref<3x1x128xf32, #tpu.memory_space<vmem>>, %arg4: memref<16x128xf32, #tpu.memory_space<vmem>>) attributes {dimension_semantics = [#tpu.dimension_semantics<parallel>], iteration_bounds = array<i64: 1>, scalar_prefetch = 0 : i64, scratch_operands = 0 : i64, tpu.core_type = #tpu.core_type<tc>, window_params = [{transform_indices = @transform_0, window_bounds = array<i64: 16, 32>}, {pipeline_mode = #tpu.pipeline_mode<synchronous>, transform_indices = @transform_1, window_bounds = array<i64: 3, 128, 128>}, {pipeline_mode = #tpu.pipeline_mode<synchronous>, transform_indices = @transform_2, window_bounds = array<i64: 3, 1, 128>}, {transform_indices = @transform_3, window_bounds = array<i64: 16, 128>}]} {
    %c0 = arith.constant 0 : index
    %c0_0 = arith.constant 0 : index
    %0 = vector.load %arg1[%c0, %c0_0] : memref<16x32xbf16, #tpu.memory_space<vmem>>, vector<16x32xbf16>
    %c0_1 = arith.constant 0 : index
    %c0_2 = arith.constant 0 : index
    %c0_3 = arith.constant 0 : index
    %1 = vector.load %arg2[%c0_1, %c0_2, %c0_3] : memref<3x128x128xbf16, #tpu.memory_space<vmem>>, vector<1x32x128xbf16>
    %2 = vector.shape_cast %1 : vector<1x32x128xbf16> to vector<32x128xbf16>
    %cst = arith.constant dense<0.000000e+00> : vector<16x128xf32>
    %3 = tpu.matmul %0, %2, %cst {dimension_numbers = #tpu.dot_dimension_numbers<[1], [0], [0], [1], [0, 0, 1, 1], [], []>} : vector<16x32xbf16>, vector<32x128xbf16>, vector<16x128xf32> -> vector<16x128xf32>
    %c0_4 = arith.constant 0 : index
    %c0_5 = arith.constant 0 : index
    %c0_6 = arith.constant 0 : index
    %4 = vector.load %arg3[%c0_4, %c0_5, %c0_6] : memref<3x1x128xf32, #tpu.memory_space<vmem>>, vector<1x1x128xf32>
    %5 = vector.shape_cast %4 : vector<1x1x128xf32> to vector<1x128xf32>
    %6 = vector.broadcast %5 : vector<1x128xf32> to vector<16x128xf32>
    %7 = arith.addf %3, %6 : vector<16x128xf32>
    %cst_7 = arith.constant 0.000000e+00 : f32
    %8 = vector.broadcast %cst_7 : f32 to vector<16x128xf32>
    %9 = arith.maximumf %7, %8 : vector<16x128xf32>
    %10 = arith.truncf %9 : vector<16x128xf32> to vector<16x128xbf16>
    %c1 = arith.constant 1 : index
    %c0_8 = arith.constant 0 : index
    %c0_9 = arith.constant 0 : index
    %11 = vector.load %arg2[%c1, %c0_8, %c0_9] : memref<3x128x128xbf16, #tpu.memory_space<vmem>>, vector<1x128x128xbf16>
    %12 = vector.shape_cast %11 : vector<1x128x128xbf16> to vector<128x128xbf16>
    %cst_10 = arith.constant dense<0.000000e+00> : vector<16x128xf32>
    %13 = tpu.matmul %10, %12, %cst_10 {dimension_numbers = #tpu.dot_dimension_numbers<[1], [0], [0], [1], [0, 0, 1, 1], [], []>} : vector<16x128xbf16>, vector<128x128xbf16>, vector<16x128xf32> -> vector<16x128xf32>
    %c1_11 = arith.constant 1 : index
    %c0_12 = arith.constant 0 : index
    %c0_13 = arith.constant 0 : index
    %14 = vector.load %arg3[%c1_11, %c0_12, %c0_13] : memref<3x1x128xf32, #tpu.memory_space<vmem>>, vector<1x1x128xf32>
    %15 = vector.shape_cast %14 : vector<1x1x128xf32> to vector<1x128xf32>
    %16 = vector.broadcast %15 : vector<1x128xf32> to vector<16x128xf32>
    %17 = arith.addf %13, %16 : vector<16x128xf32>
    %cst_14 = arith.constant 0.000000e+00 : f32
    %18 = vector.broadcast %cst_14 : f32 to vector<16x128xf32>
    %19 = arith.maximumf %17, %18 : vector<16x128xf32>
    %20 = arith.truncf %19 : vector<16x128xf32> to vector<16x128xbf16>
    %c2 = arith.constant 2 : index
    %c0_15 = arith.constant 0 : index
    %c0_16 = arith.constant 0 : index
    %21 = vector.load %arg2[%c2, %c0_15, %c0_16] : memref<3x128x128xbf16, #tpu.memory_space<vmem>>, vector<1x128x128xbf16>
    %22 = vector.shape_cast %21 : vector<1x128x128xbf16> to vector<128x128xbf16>
    %cst_17 = arith.constant dense<0.000000e+00> : vector<16x128xf32>
    %23 = tpu.matmul %20, %22, %cst_17 {dimension_numbers = #tpu.dot_dimension_numbers<[1], [0], [0], [1], [0, 0, 1, 1], [], []>} : vector<16x128xbf16>, vector<128x128xbf16>, vector<16x128xf32> -> vector<16x128xf32>
    %c2_18 = arith.constant 2 : index
    %c0_19 = arith.constant 0 : index
    %c0_20 = arith.constant 0 : index
    %24 = vector.load %arg3[%c2_18, %c0_19, %c0_20] : memref<3x1x128xf32, #tpu.memory_space<vmem>>, vector<1x1x128xf32>
    %25 = vector.shape_cast %24 : vector<1x1x128xf32> to vector<1x128xf32>
    %26 = vector.broadcast %25 : vector<1x128xf32> to vector<16x128xf32>
    %27 = arith.addf %23, %26 : vector<16x128xf32>
    %c0_21 = arith.constant 0 : index
    %c0_22 = arith.constant 0 : index
    %28 = vector.load %arg4[%c0_21, %c0_22] : memref<16x128xf32, #tpu.memory_space<vmem>>, vector<16x128xf32>
    tpu.vector_store %arg4[%c0_21, %c0_22], %27 {strides = array<i32>} : memref<16x128xf32, #tpu.memory_space<vmem>>, vector<16x128xf32>,
    return
  }
  func.func @transform_0(%arg0: i32) -> (i32, i32) {
    %c0_i32 = arith.constant 0 : i32
    %c0_i32_0 = arith.constant 0 : i32
    return %arg0, %c0_i32 : i32, i32
  }
  func.func @transform_1(%arg0: i32) -> (i32, i32, i32) {
    %c0_i32 = arith.constant 0 : i32
    %c0_i32_0 = arith.constant 0 : i32
    %c0_i32_1 = arith.constant 0 : i32
    %c0_i32_2 = arith.constant 0 : i32
    return %c0_i32, %c0_i32_0, %c0_i32_1 : i32, i32, i32
  }
  func.func @transform_2(%arg0: i32) -> (i32, i32, i32) {
    %c0_i32 = arith.constant 0 : i32
    %c0_i32_0 = arith.constant 0 : i32
    %c0_i32_1 = arith.constant 0 : i32
    %c0_i32_2 = arith.constant 0 : i32
    return %c0_i32, %c0_i32_0, %c0_i32_1 : i32, i32, i32
  }
  func.func @transform_3(%arg0: i32) -> (i32, i32) {
    %c0_i32 = arith.constant 0 : i32
    %c0_i32_0 = arith.constant 0 : i32
    return %arg0, %c0_i32 : i32, i32
  }
}

</mosaic_0001>

<llo_original>
// kernel: tpu_custom_call.1
$region0: #{tpu_custom_call.1}
  #allocation0 [shape = 'u32[]', space=smem, size = 0x4, offset = 0x4, fixed_abs, tag = 'smem constant byte address 0x4 - core index']
  #allocation1 [shape = 'u32[144,128]{1,0:T(1,128)}', space=vmem, size = 0x12000, scoped, tag = 'internal scratch']
  %s0 = inlined_call_operand.hbm [shape: bf16[16,32], index: 0, kind: input, shape index: {}]
  %s1 = inlined_call_operand.hbm [shape: bf16[3,128,128], index: 1, kind: input, shape index: {}]
  %s2 = inlined_call_operand.vmem [shape: f32[3,1,128], index: 2, kind: input, shape index: {}]
  %s3 = inlined_call_operand.hbm [shape: f32[16,128], index: 3, kind: output, shape index: {}]
  %s4 = sld [smem:[#allocation0]]
  $region30: #{tpu_custom_call.1} parent=0
    _
  %s6 = ssub.s32 1, %s4
  %s7 = scalar_select 0, %s6, %s4
  $region1: #{tpu_custom_call.1} parent=0
    #allocation2 [shape = 'u8[4096]{0}', space=vmem, size = 0x1000, scoped, tag = 'input window, operand 0, single buffered']
    #allocation3 [shape = 's32[1]{0}', space=sflag, size = 0x4, scoped, tag = 'scoped memory for tpu_custom_call.1']
    #allocation4 [shape = 's32[1]{0}', space=sflag, size = 0x4, scoped, tag = 'scoped memory for tpu_custom_call.1']
    #allocation5 [shape = 'u8[98304]{0}', space=vmem, size = 0x18000, scoped, tag = 'input window, operand 1, single buffered']
    #allocation6 [shape = 's32[1]{0}', space=sflag, size = 0x4, scoped, tag = 'scoped memory for tpu_custom_call.1']
    #allocation7 [shape = 'u8[8192]{0}', space=vmem, size = 0x2000, scoped, tag = 'output window, operand 0, single buffered']
    %8 = vsyncpa [#allocation3], 0
    %9 = vsyncpa [#allocation6], 0
    %10 = vsyncpa [#allocation4], 0
    // Predicated region
    $region2: #{tpu_custom_call.1} parent=1 // pred_check
      _
    $region3: #{tpu_custom_call.1} parent=1 // pred_check_branch
      %12 = sbr.rel (0) target = $region5
    $region4: #{tpu_custom_call.1} parent=1 // pred_region
      %s14 = ssub.s32 128, 128
      %15 = vsyncadd [#allocation3], %s14
      %s16 = sshll.u32 [#allocation2], 4
      %s17 = int_to_ptr.vmem [resolvable:$true] %s16
      %22 = dma.hbm_to_vmem [thread:$0]  %s0, 128, %s17, [#allocation3], 64, 64, 4
    $region5: #{tpu_custom_call.1} parent=1 // pred_fallthru
      _
    // Predicated region
    $region6: #{tpu_custom_call.1} parent=1 // pred_check
      _
    $region7: #{tpu_custom_call.1} parent=1 // pred_check_branch
      %24 = sbr.rel (0) target = $region9
    $region8: #{tpu_custom_call.1} parent=1 // pred_region
      %s26 = ssub.s32 3072, 3072
      %27 = vsyncadd [#allocation6], %s26
      %s28 = sshll.u32 [#allocation5], 4
      %s29 = int_to_ptr.vmem [resolvable:$true] %s28
      %34 = dma.hbm_to_vmem [thread:$0]  %s1, 3072, %s29, [#allocation6], 64, 64, 4
    $region9: #{tpu_custom_call.1} parent=1 // pred_fallthru
      _
    // Predicated region
    $region10: #{tpu_custom_call.1} parent=1 // pred_check
      _
    $region11: #{tpu_custom_call.1} parent=1 // pred_check_branch
      %36 = sbr.rel (0) target = $region13
    $region12: #{tpu_custom_call.1} parent=1 // pred_region
      _
    $region13: #{tpu_custom_call.1} parent=1 // pred_fallthru
      _
    // Predicated region
    $region14: #{tpu_custom_call.1} parent=1 // pred_check
      _
    $region15: #{tpu_custom_call.1} parent=1 // pred_check_branch
      %38 = sbr.rel (0) target = $region17
    $region16: #{tpu_custom_call.1} parent=1 // pred_region
      %39 = dma.done [#allocation3], 128
    $region17: #{tpu_custom_call.1} parent=1 // pred_fallthru
      _
    // Predicated region
    $region18: #{tpu_custom_call.1} parent=1 // pred_check
      _
    $region19: #{tpu_custom_call.1} parent=1 // pred_check_branch
      %41 = sbr.rel (0) target = $region21
    $region20: #{tpu_custom_call.1} parent=1 // pred_region
      %42 = dma.done [#allocation6], 3072
    $region21: #{tpu_custom_call.1} parent=1 // pred_fallthru
      _
    %v44 = vld [vmem:[#allocation2] sm:$0xf]
    %v45 = vld [vmem:[#allocation2 + $0x4] sm:$0xf]
    %v46 = vld [vmem:[#allocation5] sm:$0xf]
    %v47 = vld [vmem:[#allocation5 + $0x4] sm:$0xf]
    %v48 = vld [vmem:[#allocation5 + $0x8] sm:$0xf]
    %v49 = vld [vmem:[#allocation5 + $0xc] sm:$0xf]
    %v50 = vld [vmem:[%s2] sm:$0x1]
    %v52 = vlaneseq
    %v53 = vshrl.u32 %v52, 7
    %v54 = vsub.s32 0, %v53
    %v55 = vrot.slane %v50, %v54
    %v59 = vunpack.c.l.b16 %v44
    %v60 = vunpack.c.l.b16 %v45
    %v61 = vpack.c.b16 %v60, %v59
    %v66 = vunpack.c.l.b16 %v46
    %v67 = vunpack.c.l.b16 %v47
    %v68 = vunpack.c.l.b16 %v48
    %v69 = vunpack.c.l.b16 %v49
    %v70 = vpack.c.b16 %v67, %v66
    %v71 = vpack.c.b16 %v69, %v68
    %vm74 = vcmask 261120
    %v76 = vsel %vm74, %v61, 0
    %78 = vmatprep.subr.bf16.mxu0 0
    %79 = vmatpush1.bf16.msra.mxu0 0
    %80 = vmatprep.subr.bf16.mxu0 0
    %81 = vmatpush1.bf16.msra.mxu0 0
    %82 = vmatprep.subr.bf16.mxu0 0
    %83 = vmatpush1.bf16.msra.mxu0 0
    %84 = vmatprep.subr.bf16.mxu0 0
    %85 = vmatpush1.bf16.msra.mxu0 0
    %86 = vmatprep.subr.bf16.mxu0 0
    %87 = vmatpush1.bf16.msra.mxu0 0
    %88 = vmatprep.subr.bf16.mxu0 0
    %89 = vmatpush1.bf16.msra.mxu0 0
    %90 = vmatprep.subr.bf16.mxu0 0
    %91 = vmatpush1.bf16.msra.mxu0 %v71
    %92 = vmatprep.subr.bf16.mxu0 0
    %93 = vmatpush1.bf16.msra.mxu0 %v70
    %94 = vmatprep.subr.bf16.mxu0 0
    %95 = vmatpush2.bf16.msra.mxu0 0
    %96 = vmatprep.subr.bf16.mxu0 0
    %97 = vmatpush2.bf16.msra.mxu0 0
    %98 = vmatprep.subr.bf16.mxu0 0
    %99 = vmatpush2.bf16.msra.mxu0 0
    %100 = vmatprep.subr.bf16.mxu0 0
    %101 = vmatpush2.bf16.msra.mxu0 0
    %102 = vmatprep.subr.bf16.mxu0 0
    %103 = vmatpush2.bf16.msra.mxu0 0
    %104 = vmatprep.subr.bf16.mxu0 0
    %105 = vmatpush2.bf16.msra.mxu0 0
    %106 = vmatprep.subr.bf16.mxu0 0
    %107 = vmatpush2.bf16.msra.mxu0 0
    %108 = vmatprep.subr.bf16.mxu0 0
    %109 = vmatpush2.bf16.msra.mxu0 0
    %110 = vmatprep.mubr.bf16.mxu0 0
    %111 = vmatmul.mubr.bf16.gmra.mxu0 %v76
    %v112 = vpop.f32.mrf.mxu0
    %v113 = vadd.f32 %v55, %v112
    %v114 = vpop.f32.mrf.mxu0
    %v115 = vpop.f32.mrf.mxu0
    %v116 = vadd.f32 %v55, %v115
    %v117 = vpop.f32.mrf.mxu0
    %118 = vdwg.mxu0
    %v119 = vmax.f32 %v113, 0.0
    %v120 = vmax.f32 %v116, 0.0
    %v121 = vpack.c.bf16 %v120, %v119
    %s122 = scalar_lea.vmem [#allocation5], 64
    %v123 = vld [vmem:[%s122] sm:$0xf]
    %v124 = vld [vmem:[%s122 + $0x4] sm:$0xf]
    %v125 = vld [vmem:[%s122 + $0x8] sm:$0xf]
    %v126 = vld [vmem:[%s122 + $0xc] sm:$0xf]
    %v127 = vld [vmem:[%s122 + $0x10] sm:$0xf]
    %v128 = vld [vmem:[%s122 + $0x14] sm:$0xf]
    %v129 = vld [vmem:[%s122 + $0x18] sm:$0xf]
    %v130 = vld [vmem:[%s122 + $0x1c] sm:$0xf]
    %v131 = vld [vmem:[%s122 + $0x20] sm:$0xf]
    %v132 = vld [vmem:[%s122 + $0x24] sm:$0xf]
    %v133 = vld [vmem:[%s122 + $0x28] sm:$0xf]
    %v134 = vld [vmem:[%s122 + $0x2c] sm:$0xf]
    %v135 = vld [vmem:[%s122 + $0x30] sm:$0xf]
    %v136 = vld [vmem:[%s122 + $0x34] sm:$0xf]
    %v137 = vld [vmem:[%s122 + $0x38] sm:$0xf]
    %v138 = vld [vmem:[%s122 + $0x3c] sm:$0xf]
    %s139 = scalar_lea.vmem %s2, 1
    %v140 = vld [vmem:[%s139] sm:$0x1]
    %v142 = vlaneseq
    %v143 = vshrl.u32 %v142, 7
    %v144 = vsub.s32 0, %v143
    %v145 = vrot.slane %v140, %v144
    %v163 = vunpack.c.l.b16 %v123
    %v164 = vunpack.c.l.b16 %v124
    %v165 = vunpack.c.l.b16 %v125
    %v166 = vunpack.c.l.b16 %v126
    %v167 = vunpack.c.l.b16 %v127
    %v168 = vunpack.c.l.b16 %v128
    %v169 = vunpack.c.l.b16 %v129
    %v170 = vunpack.c.l.b16 %v130
    %v171 = vunpack.c.l.b16 %v131
    %v172 = vunpack.c.l.b16 %v132
    %v173 = vunpack.c.l.b16 %v133
    %v174 = vunpack.c.l.b16 %v134
    %v175 = vunpack.c.l.b16 %v135
    %v176 = vunpack.c.l.b16 %v136
    %v177 = vunpack.c.l.b16 %v137
    %v178 = vunpack.c.l.b16 %v138
    %v179 = vpack.c.b16 %v164, %v163
    %v180 = vpack.c.b16 %v166, %v165
    %v181 = vpack.c.b16 %v168, %v167
    %v182 = vpack.c.b16 %v170, %v169
    %v183 = vpack.c.b16 %v172, %v171
    %v184 = vpack.c.b16 %v174, %v173
    %v185 = vpack.c.b16 %v176, %v175
    %v186 = vpack.c.b16 %v178, %v177
    %195 = vmatprep.subr.bf16.mxu0 0
    %196 = vmatpush1.bf16.msra.mxu0 %v186
    %197 = vmatprep.subr.bf16.mxu0 0
    %198 = vmatpush1.bf16.msra.mxu0 %v185
    %199 = vmatprep.subr.bf16.mxu0 0
    %200 = vmatpush1.bf16.msra.mxu0 %v184
    %201 = vmatprep.subr.bf16.mxu0 0
    %202 = vmatpush1.bf16.msra.mxu0 %v183
    %203 = vmatprep.subr.bf16.mxu0 0
    %204 = vmatpush1.bf16.msra.mxu0 %v182
    %205 = vmatprep.subr.bf16.mxu0 0
    %206 = vmatpush1.bf16.msra.mxu0 %v181
    %207 = vmatprep.subr.bf16.mxu0 0
    %208 = vmatpush1.bf16.msra.mxu0 %v180
    %209 = vmatprep.subr.bf16.mxu0 0
    %210 = vmatpush1.bf16.msra.mxu0 %v179
    %211 = vmatprep.subr.bf16.mxu0 0
    %212 = vmatpush2.bf16.msra.mxu0 0
    %213 = vmatprep.subr.bf16.mxu0 0
    %214 = vmatpush2.bf16.msra.mxu0 0
    %215 = vmatprep.subr.bf16.mxu0 0
    %216 = vmatpush2.bf16.msra.mxu0 0
    %217 = vmatprep.subr.bf16.mxu0 0
    %218 = vmatpush2.bf16.msra.mxu0 0
    %219 = vmatprep.subr.bf16.mxu0 0
    %220 = vmatpush2.bf16.msra.mxu0 0
    %221 = vmatprep.subr.bf16.mxu0 0
    %222 = vmatpush2.bf16.msra.mxu0 0
    %223 = vmatprep.subr.bf16.mxu0 0
    %224 = vmatpush2.bf16.msra.mxu0 0
    %225 = vmatprep.subr.bf16.mxu0 0
    %226 = vmatpush2.bf16.msra.mxu0 0
    %227 = vmatprep.mubr.bf16.mxu0 0
    %228 = vmatmul.mubr.bf16.gmra.mxu0 %v121
    %v229 = vpop.f32.mrf.mxu0
    %v230 = vadd.f32 %v145, %v229
    %v231 = vpop.f32.mrf.mxu0
    %v232 = vpop.f32.mrf.mxu0
    %v233 = vadd.f32 %v145, %v232
    %v234 = vpop.f32.mrf.mxu0
    %235 = vdwg.mxu0
    %v236 = vmax.f32 %v230, 0.0
    %v237 = vmax.f32 %v233, 0.0
    %v238 = vpack.c.bf16 %v237, %v236
    %s239 = scalar_lea.vmem [#allocation5], 128
    %v240 = vld [vmem:[%s239] sm:$0xf]
    %v241 = vld [vmem:[%s239 + $0x4] sm:$0xf]
    %v242 = vld [vmem:[%s239 + $0x8] sm:$0xf]
    %v243 = vld [vmem:[%s239 + $0xc] sm:$0xf]
    %v244 = vld [vmem:[%s239 + $0x10] sm:$0xf]
    %v245 = vld [vmem:[%s239 + $0x14] sm:$0xf]
    %v246 = vld [vmem:[%s239 + $0x18] sm:$0xf]
    %v247 = vld [vmem:[%s239 + $0x1c] sm:$0xf]
    %v248 = vld [vmem:[%s239 + $0x20] sm:$0xf]
    %v249 = vld [vmem:[%s239 + $0x24] sm:$0xf]
    %v250 = vld [vmem:[%s239 + $0x28] sm:$0xf]
    %v251 = vld [vmem:[%s239 + $0x2c] sm:$0xf]
    %v252 = vld [vmem:[%s239 + $0x30] sm:$0xf]
    %v253 = vld [vmem:[%s239 + $0x34] sm:$0xf]
    %v254 = vld [vmem:[%s239 + $0x38] sm:$0xf]
    %v255 = vld [vmem:[%s239 + $0x3c] sm:$0xf]
    %s256 = scalar_lea.vmem %s2, 2
    %v257 = vld [vmem:[%s256] sm:$0x1]
    %v259 = vlaneseq
    %v260 = vshrl.u32 %v259, 7
    %v261 = vsub.s32 0, %v260
    %v262 = vrot.slane %v257, %v261
    %v280 = vunpack.c.l.b16 %v240
    %v281 = vunpack.c.l.b16 %v241
    %v282 = vunpack.c.l.b16 %v242
    %v283 = vunpack.c.l.b16 %v243
    %v284 = vunpack.c.l.b16 %v244
    %v285 = vunpack.c.l.b16 %v245
    %v286 = vunpack.c.l.b16 %v246
    %v287 = vunpack.c.l.b16 %v247
    %v288 = vunpack.c.l.b16 %v248
    %v289 = vunpack.c.l.b16 %v249
    %v290 = vunpack.c.l.b16 %v250
    %v291 = vunpack.c.l.b16 %v251
    %v292 = vunpack.c.l.b16 %v252
    %v293 = vunpack.c.l.b16 %v253
    %v294 = vunpack.c.l.b16 %v254
    %v295 = vunpack.c.l.b16 %v255
    %v296 = vpack.c.b16 %v281, %v280
    %v297 = vpack.c.b16 %v283, %v282
    %v298 = vpack.c.b16 %v285, %v284
    %v299 = vpack.c.b16 %v287, %v286
    %v300 = vpack.c.b16 %v289, %v288
    %v301 = vpack.c.b16 %v291, %v290
    %v302 = vpack.c.b16 %v293, %v292
    %v303 = vpack.c.b16 %v295, %v294
    %312 = vmatprep.subr.bf16.mxu0 0
    %313 = vmatpush1.bf16.msra.mxu0 %v303
    %314 = vmatprep.subr.bf16.mxu0 0
    %315 = vmatpush1.bf16.msra.mxu0 %v302
    %316 = vmatprep.subr.bf16.mxu0 0
    %317 = vmatpush1.bf16.msra.mxu0 %v301
    %318 = vmatprep.subr.bf16.mxu0 0
    %319 = vmatpush1.bf16.msra.mxu0 %v300
    %320 = vmatprep.subr.bf16.mxu0 0
    %321 = vmatpush1.bf16.msra.mxu0 %v299
    %322 = vmatprep.subr.bf16.mxu0 0
    %323 = vmatpush1.bf16.msra.mxu0 %v298
    %324 = vmatprep.subr.bf16.mxu0 0
    %325 = vmatpush1.bf16.msra.mxu0 %v297
    %326 = vmatprep.subr.bf16.mxu0 0
    %327 = vmatpush1.bf16.msra.mxu0 %v296
    %328 = vmatprep.subr.bf16.mxu0 0
    %329 = vmatpush2.bf16.msra.mxu0 0
    %330 = vmatprep.subr.bf16.mxu0 0
    %331 = vmatpush2.bf16.msra.mxu0 0
    %332 = vmatprep.subr.bf16.mxu0 0
    %333 = vmatpush2.bf16.msra.mxu0 0
    %334 = vmatprep.subr.bf16.mxu0 0
    %335 = vmatpush2.bf16.msra.mxu0 0
    %336 = vmatprep.subr.bf16.mxu0 0
    %337 = vmatpush2.bf16.msra.mxu0 0
    %338 = vmatprep.subr.bf16.mxu0 0
    %339 = vmatpush2.bf16.msra.mxu0 0
    %340 = vmatprep.subr.bf16.mxu0 0
    %341 = vmatpush2.bf16.msra.mxu0 0
    %342 = vmatprep.subr.bf16.mxu0 0
    %343 = vmatpush2.bf16.msra.mxu0 0
    %344 = vmatprep.mubr.bf16.mxu0 0
    %345 = vmatmul.mubr.bf16.gmra.mxu0 %v238
    %v346 = vpop.f32.mrf.mxu0
    %v347 = vadd.f32 %v262, %v346
    %v348 = vpop.f32.mrf.mxu0
    %v349 = vpop.f32.mrf.mxu0
    %v350 = vadd.f32 %v262, %v349
    %v351 = vpop.f32.mrf.mxu0
    %352 = vdwg.mxu0
    %353 = vst [vmem:[#allocation7] sm:$0xff] %v347
    %354 = vst [vmem:[#allocation7 + $0x8] sm:$0xff] %v350
    // Predicated region
    $region22: #{tpu_custom_call.1} parent=1 // pred_check
      _
    $region23: #{tpu_custom_call.1} parent=1 // pred_check_branch
      %356 = sbr.rel (0) target = $region25
    $region24: #{tpu_custom_call.1} parent=1 // pred_region
      %s358 = ssub.s32 256, 256
      %359 = vsyncadd [#allocation4], %s358
      %s360 = sshll.u32 [#allocation7], 4
      %s361 = int_to_ptr.vmem [resolvable:$true] %s360
      %366 = dma.vmem_to_hbm [thread:$0]  %s361, 256, %s3, [#allocation4], 128, 128, 8
    $region25: #{tpu_custom_call.1} parent=1 // pred_fallthru
      _
    // Predicated region
    $region26: #{tpu_custom_call.1} parent=1 // pred_check
      _
    $region27: #{tpu_custom_call.1} parent=1 // pred_check_branch
      %368 = sbr.rel (0) target = $region29
    $region28: #{tpu_custom_call.1} parent=1 // pred_region
      %369 = dma.done [#allocation4], 256
    $region29: #{tpu_custom_call.1} parent=1 // pred_fallthru
      _
    %370 = vsyncpa [#allocation3], 1
    %371 = vsyncpa [#allocation6], 1
    %372 = vsyncpa [#allocation4], 1

// kernel: tpu_custom_call.1
$region0: #{tpu_custom_call.1}
  #allocation0 [shape = 'u32[]', space=smem, size = 0x4, offset = 0x4, fixed_abs, tag = 'smem constant byte address 0x4 - core index']
  #allocation1 [shape = 'u32[144,128]{1,0:T(1,128)}', space=vmem, size = 0x12000, scoped, tag = 'internal scratch']
  %s0 = inlined_call_operand.hbm [shape: bf16[16,32], index: 0, kind: input, shape index: {}]
  %s1 = inlined_call_operand.hbm [shape: bf16[3,128,128], index: 1, kind: input, shape index: {}]
  %s2 = inlined_call_operand.vmem [shape: f32[3,1,128], index: 2, kind: input, shape index: {}]
  %s3 = inlined_call_operand.hbm [shape: f32[16,128], index: 3, kind: output, shape index: {}]
  %s4 = sld [smem:[#allocation0]]
  $region30: #{tpu_custom_call.1} parent=0
    _
  %s6 = ssub.s32 1, %s4
  %s7 = scalar_select 0, %s6, %s4
  $region1: #{tpu_custom_call.1} parent=0
    #allocation2 [shape = 'u8[4096]{0}', space=vmem, size = 0x1000, scoped, tag = 'input window, operand 0, single buffered']
    #allocation3 [shape = 's32[1]{0}', space=sflag, size = 0x4, scoped, tag = 'scoped memory for tpu_custom_call.1']
    #allocation4 [shape = 's32[1]{0}', space=sflag, size = 0x4, scoped, tag = 'scoped memory for tpu_custom_call.1']
    #allocation5 [shape = 'u8[98304]{0}', space=vmem, size = 0x18000, scoped, tag = 'input window, operand 1, single buffered']
    #allocation6 [shape = 's32[1]{0}', space=sflag, size = 0x4, scoped, tag = 'scoped memory for tpu_custom_call.1']
    #allocation7 [shape = 'u8[8192]{0}', space=vmem, size = 0x2000, scoped, tag = 'output window, operand 0, single buffered']
    %8 = vsyncpa [#allocation3], 0
    %9 = vsyncpa [#allocation6], 0
    %10 = vsyncpa [#allocation4], 0
    // Predicated region
    $region2: #{tpu_custom_call.1} parent=1 // pred_check
      _
    $region3: #{tpu_custom_call.1} parent=1 // pred_check_branch
      %12 = sbr.rel (0) target = $region5
    $region4: #{tpu_custom_call.1} parent=1 // pred_region
      %s14 = ssub.s32 128, 128
      %15 = vsyncadd [#allocation3], %s14
      %s16 = sshll.u32 [#allocation2], 4
      %s17 = int_to_ptr.vmem [resolvable:$true] %s16
      %22 = dma.hbm_to_vmem [thread:$0]  %s0, 128, %s17, [#allocation3], 64, 64, 4
    $region5: #{tpu_custom_call.1} parent=1 // pred_fallthru
      _
    // Predicated region
    $region6: #{tpu_custom_call.1} parent=1 // pred_check
      _
    $region7: #{tpu_custom_call.1} parent=1 // pred_check_branch
      %24 = sbr.rel (0) target = $region9
    $region8: #{tpu_custom_call.1} parent=1 // pred_region
      %s26 = ssub.s32 3072, 3072
      %27 = vsyncadd [#allocation6], %s26
      %s28 = sshll.u32 [#allocation5], 4
      %s29 = int_to_ptr.vmem [resolvable:$true] %s28
      %34 = dma.hbm_to_vmem [thread:$0]  %s1, 3072, %s29, [#allocation6], 64, 64, 4
    $region9: #{tpu_custom_call.1} parent=1 // pred_fallthru
      _
    // Predicated region
    $region10: #{tpu_custom_call.1} parent=1 // pred_check
      _
    $region11: #{tpu_custom_call.1} parent=1 // pred_check_branch
      %36 = sbr.rel (0) target = $region13
    $region12: #{tpu_custom_call.1} parent=1 // pred_region
      _
    $region13: #{tpu_custom_call.1} parent=1 // pred_fallthru
      _
    // Predicated region
    $region14: #{tpu_custom_call.1} parent=1 // pred_check
      _
    $region15: #{tpu_custom_call.1} parent=1 // pred_check_branch
      %38 = sbr.rel (0) target = $region17
    $region16: #{tpu_custom_call.1} parent=1 // pred_region
      %39 = dma.done [#allocation3], 128
    $region17: #{tpu_custom_call.1} parent=1 // pred_fallthru
      _
    // Predicated region
    $region18: #{tpu_custom_call.1} parent=1 // pred_check
      _
    $region19: #{tpu_custom_call.1} parent=1 // pred_check_branch
      %41 = sbr.rel (0) target = $region21
    $region20: #{tpu_custom_call.1} parent=1 // pred_region
      %42 = dma.done [#allocation6], 3072
    $region21: #{tpu_custom_call.1} parent=1 // pred_fallthru
      _
    %v44 = vld [vmem:[#allocation2] sm:$0xf]
    %v45 = vld [vmem:[#allocation2 + $0x4] sm:$0xf]
    %v46 = vld [vmem:[#allocation5] sm:$0xf]
    %v47 = vld [vmem:[#allocation5 + $0x4] sm:$0xf]
    %v48 = vld [vmem:[#allocation5 + $0x8] sm:$0xf]
    %v49 = vld [vmem:[#allocation5 + $0xc] sm:$0xf]
    %v50 = vld [vmem:[%s2] sm:$0x1]
    %v52 = vlaneseq
    %v53 = vshrl.u32 %v52, 7
    %v54 = vsub.s32 0, %v53
    %v55 = vrot.slane %v50, %v54
    %v59 = vunpack.c.l.b16 %v44
    %v60 = vunpack.c.l.b16 %v45
    %v61 = vpack.c.b16 %v60, %v59
    %v66 = vunpack.c.l.b16 %v46
    %v67 = vunpack.c.l.b16 %v47
    %v68 = vunpack.c.l.b16 %v48
    %v69 = vunpack.c.l.b16 %v49
    %v70 = vpack.c.b16 %v67, %v66
    %v71 = vpack.c.b16 %v69, %v68
    %vm74 = vcmask 261120
    %v76 = vsel %vm74, %v61, 0
    %78 = vmatprep.subr.bf16.mxu0 0
    %79 = vmatpush1.bf16.msra.mxu0 0
    %80 = vmatprep.subr.bf16.mxu0 0
    %81 = vmatpush1.bf16.msra.mxu0 0
    %82 = vmatprep.subr.bf16.mxu0 0
    %83 = vmatpush1.bf16.msra.mxu0 0
    %84 = vmatprep.subr.bf16.mxu0 0
    %85 = vmatpush1.bf16.msra.mxu0 0
    %86 = vmatprep.subr.bf16.mxu0 0
    %87 = vmatpush1.bf16.msra.mxu0 0
    %88 = vmatprep.subr.bf16.mxu0 0
    %89 = vmatpush1.bf16.msra.mxu0 0
    %90 = vmatprep.subr.bf16.mxu0 0
    %91 = vmatpush1.bf16.msra.mxu0 %v71
    %92 = vmatprep.subr.bf16.mxu0 0
    %93 = vmatpush1.bf16.msra.mxu0 %v70
    %94 = vmatprep.subr.bf16.mxu0 0
    %95 = vmatpush2.bf16.msra.mxu0 0
    %96 = vmatprep.subr.bf16.mxu0 0
    %97 = vmatpush2.bf16.msra.mxu0 0
    %98 = vmatprep.subr.bf16.mxu0 0
    %99 = vmatpush2.bf16.msra.mxu0 0
    %100 = vmatprep.subr.bf16.mxu0 0
    %101 = vmatpush2.bf16.msra.mxu0 0
    %102 = vmatprep.subr.bf16.mxu0 0
    %103 = vmatpush2.bf16.msra.mxu0 0
    %104 = vmatprep.subr.bf16.mxu0 0
    %105 = vmatpush2.bf16.msra.mxu0 0
    %106 = vmatprep.subr.bf16.mxu0 0
    %107 = vmatpush2.bf16.msra.mxu0 0
    %108 = vmatprep.subr.bf16.mxu0 0
    %109 = vmatpush2.bf16.msra.mxu0 0
    %110 = vmatprep.mubr.bf16.mxu0 0
    %111 = vmatmul.mubr.bf16.gmra.mxu0 %v76
    %v112 = vpop.f32.mrf.mxu0
    %v113 = vadd.f32 %v55, %v112
    %v114 = vpop.f32.mrf.mxu0
    %v115 = vpop.f32.mrf.mxu0
    %v116 = vadd.f32 %v55, %v115
    %v117 = vpop.f32.mrf.mxu0
    %118 = vdwg.mxu0
    %v119 = vmax.f32 %v113, 0.0
    %v120 = vmax.f32 %v116, 0.0
    %v121 = vpack.c.bf16 %v120, %v119
    %s122 = scalar_lea.vmem [#allocation5], 64
    %v123 = vld [vmem:[%s122] sm:$0xf]
    %v124 = vld [vmem:[%s122 + $0x4] sm:$0xf]
    %v125 = vld [vmem:[%s122 + $0x8] sm:$0xf]
    %v126 = vld [vmem:[%s122 + $0xc] sm:$0xf]
    %v127 = vld [vmem:[%s122 + $0x10] sm:$0xf]
    %v128 = vld [vmem:[%s122 + $0x14] sm:$0xf]
    %v129 = vld [vmem:[%s122 + $0x18] sm:$0xf]
    %v130 = vld [vmem:[%s122 + $0x1c] sm:$0xf]
    %v131 = vld [vmem:[%s122 + $0x20] sm:$0xf]
    %v132 = vld [vmem:[%s122 + $0x24] sm:$0xf]
    %v133 = vld [vmem:[%s122 + $0x28] sm:$0xf]
    %v134 = vld [vmem:[%s122 + $0x2c] sm:$0xf]
    %v135 = vld [vmem:[%s122 + $0x30] sm:$0xf]
    %v136 = vld [vmem:[%s122 + $0x34] sm:$0xf]
    %v137 = vld [vmem:[%s122 + $0x38] sm:$0xf]
    %v138 = vld [vmem:[%s122 + $0x3c] sm:$0xf]
    %s139 = scalar_lea.vmem %s2, 1
    %v140 = vld [vmem:[%s139] sm:$0x1]
    %v142 = vlaneseq
    %v143 = vshrl.u32 %v142, 7
    %v144 = vsub.s32 0, %v143
    %v145 = vrot.slane %v140, %v144
    %v163 = vunpack.c.l.b16 %v123
    %v164 = vunpack.c.l.b16 %v124
    %v165 = vunpack.c.l.b16 %v125
    %v166 = vunpack.c.l.b16 %v126
    %v167 = vunpack.c.l.b16 %v127
    %v168 = vunpack.c.l.b16 %v128
    %v169 = vunpack.c.l.b16 %v129
    %v170 = vunpack.c.l.b16 %v130
    %v171 = vunpack.c.l.b16 %v131
    %v172 = vunpack.c.l.b16 %v132
    %v173 = vunpack.c.l.b16 %v133
    %v174 = vunpack.c.l.b16 %v134
    %v175 = vunpack.c.l.b16 %v135
    %v176 = vunpack.c.l.b16 %v136
    %v177 = vunpack.c.l.b16 %v137
    %v178 = vunpack.c.l.b16 %v138
    %v179 = vpack.c.b16 %v164, %v163
    %v180 = vpack.c.b16 %v166, %v165
    %v181 = vpack.c.b16 %v168, %v167
    %v182 = vpack.c.b16 %v170, %v169
    %v183 = vpack.c.b16 %v172, %v171
    %v184 = vpack.c.b16 %v174, %v173
    %v185 = vpack.c.b16 %v176, %v175
    %v186 = vpack.c.b16 %v178, %v177
    %195 = vmatprep.subr.bf16.mxu0 0
    %196 = vmatpush1.bf16.msra.mxu0 %v186
    %197 = vmatprep.subr.bf16.mxu0 0
    %198 = vmatpush1.bf16.msra.mxu0 %v185
    %199 = vmatprep.subr.bf16.mxu0 0
    %200 = vmatpush1.bf16.msra.mxu0 %v184
    %201 = vmatprep.subr.bf16.mxu0 0
    %202 = vmatpush1.bf16.msra.mxu0 %v183
    %203 = vmatprep.subr.bf16.mxu0 0
    %204 = vmatpush1.bf16.msra.mxu0 %v182
    %205 = vmatprep.subr.bf16.mxu0 0
    %206 = vmatpush1.bf16.msra.mxu0 %v181
    %207 = vmatprep.subr.bf16.mxu0 0
    %208 = vmatpush1.bf16.msra.mxu0 %v180
    %209 = vmatprep.subr.bf16.mxu0 0
    %210 = vmatpush1.bf16.msra.mxu0 %v179
    %211 = vmatprep.subr.bf16.mxu0 0
    %212 = vmatpush2.bf16.msra.mxu0 0
    %213 = vmatprep.subr.bf16.mxu0 0
    %214 = vmatpush2.bf16.msra.mxu0 0
    %215 = vmatprep.subr.bf16.mxu0 0
    %216 = vmatpush2.bf16.msra.mxu0 0
    %217 = vmatprep.subr.bf16.mxu0 0
    %218 = vmatpush2.bf16.msra.mxu0 0
    %219 = vmatprep.subr.bf16.mxu0 0
    %220 = vmatpush2.bf16.msra.mxu0 0
    %221 = vmatprep.subr.bf16.mxu0 0
    %222 = vmatpush2.bf16.msra.mxu0 0
    %223 = vmatprep.subr.bf16.mxu0 0
    %224 = vmatpush2.bf16.msra.mxu0 0
    %225 = vmatprep.subr.bf16.mxu0 0
    %226 = vmatpush2.bf16.msra.mxu0 0
    %227 = vmatprep.mubr.bf16.mxu0 0
    %228 = vmatmul.mubr.bf16.gmra.mxu0 %v121
    %v229 = vpop.f32.mrf.mxu0
    %v230 = vadd.f32 %v145, %v229
    %v231 = vpop.f32.mrf.mxu0
    %v232 = vpop.f32.mrf.mxu0
    %v233 = vadd.f32 %v145, %v232
    %v234 = vpop.f32.mrf.mxu0
    %235 = vdwg.mxu0
    %v236 = vmax.f32 %v230, 0.0
    %v237 = vmax.f32 %v233, 0.0
    %v238 = vpack.c.bf16 %v237, %v236
    %s239 = scalar_lea.vmem [#allocation5], 128
    %v240 = vld [vmem:[%s239] sm:$0xf]
    %v241 = vld [vmem:[%s239 + $0x4] sm:$0xf]
    %v242 = vld [vmem:[%s239 + $0x8] sm:$0xf]
    %v243 = vld [vmem:[%s239 + $0xc] sm:$0xf]
    %v244 = vld [vmem:[%s239 + $0x10] sm:$0xf]
    %v245 = vld [vmem:[%s239 + $0x14] sm:$0xf]
    %v246 = vld [vmem:[%s239 + $0x18] sm:$0xf]
    %v247 = vld [vmem:[%s239 + $0x1c] sm:$0xf]
    %v248 = vld [vmem:[%s239 + $0x20] sm:$0xf]
    %v249 = vld [vmem:[%s239 + $0x24] sm:$0xf]
    %v250 = vld [vmem:[%s239 + $0x28] sm:$0xf]
    %v251 = vld [vmem:[%s239 + $0x2c] sm:$0xf]
    %v252 = vld [vmem:[%s239 + $0x30] sm:$0xf]
    %v253 = vld [vmem:[%s239 + $0x34] sm:$0xf]
    %v254 = vld [vmem:[%s239 + $0x38] sm:$0xf]
    %v255 = vld [vmem:[%s239 + $0x3c] sm:$0xf]
    %s256 = scalar_lea.vmem %s2, 2
    %v257 = vld [vmem:[%s256] sm:$0x1]
    %v259 = vlaneseq
    %v260 = vshrl.u32 %v259, 7
    %v261 = vsub.s32 0, %v260
    %v262 = vrot.slane %v257, %v261
    %v280 = vunpack.c.l.b16 %v240
    %v281 = vunpack.c.l.b16 %v241
    %v282 = vunpack.c.l.b16 %v242
    %v283 = vunpack.c.l.b16 %v243
    %v284 = vunpack.c.l.b16 %v244
    %v285 = vunpack.c.l.b16 %v245
    %v286 = vunpack.c.l.b16 %v246
    %v287 = vunpack.c.l.b16 %v247
    %v288 = vunpack.c.l.b16 %v248
    %v289 = vunpack.c.l.b16 %v249
    %v290 = vunpack.c.l.b16 %v250
    %v291 = vunpack.c.l.b16 %v251
    %v292 = vunpack.c.l.b16 %v252
    %v293 = vunpack.c.l.b16 %v253
    %v294 = vunpack.c.l.b16 %v254
    %v295 = vunpack.c.l.b16 %v255
    %v296 = vpack.c.b16 %v281, %v280
    %v297 = vpack.c.b16 %v283, %v282
    %v298 = vpack.c.b16 %v285, %v284
    %v299 = vpack.c.b16 %v287, %v286
    %v300 = vpack.c.b16 %v289, %v288
    %v301 = vpack.c.b16 %v291, %v290
    %v302 = vpack.c.b16 %v293, %v292
    %v303 = vpack.c.b16 %v295, %v294
    %312 = vmatprep.subr.bf16.mxu0 0
    %313 = vmatpush1.bf16.msra.mxu0 %v303
    %314 = vmatprep.subr.bf16.mxu0 0
    %315 = vmatpush1.bf16.msra.mxu0 %v302
    %316 = vmatprep.subr.bf16.mxu0 0
    %317 = vmatpush1.bf16.msra.mxu0 %v301
    %318 = vmatprep.subr.bf16.mxu0 0
    %319 = vmatpush1.bf16.msra.mxu0 %v300
    %320 = vmatprep.subr.bf16.mxu0 0
    %321 = vmatpush1.bf16.msra.mxu0 %v299
    %322 = vmatprep.subr.bf16.mxu0 0
    %323 = vmatpush1.bf16.msra.mxu0 %v298
    %324 = vmatprep.subr.bf16.mxu0 0
    %325 = vmatpush1.bf16.msra.mxu0 %v297
    %326 = vmatprep.subr.bf16.mxu0 0
    %327 = vmatpush1.bf16.msra.mxu0 %v296
    %328 = vmatprep.subr.bf16.mxu0 0
    %329 = vmatpush2.bf16.msra.mxu0 0
    %330 = vmatprep.subr.bf16.mxu0 0
    %331 = vmatpush2.bf16.msra.mxu0 0
    %332 = vmatprep.subr.bf16.mxu0 0
    %333 = vmatpush2.bf16.msra.mxu0 0
    %334 = vmatprep.subr.bf16.mxu0 0
    %335 = vmatpush2.bf16.msra.mxu0 0
    %336 = vmatprep.subr.bf16.mxu0 0
    %337 = vmatpush2.bf16.msra.mxu0 0
    %338 = vmatprep.subr.bf16.mxu0 0
    %339 = vmatpush2.bf16.msra.mxu0 0
    %340 = vmatprep.subr.bf16.mxu0 0
    %341 = vmatpush2.bf16.msra.mxu0 0
    %342 = vmatprep.subr.bf16.mxu0 0
    %343 = vmatpush2.bf16.msra.mxu0 0
    %344 = vmatprep.mubr.bf16.mxu0 0
    %345 = vmatmul.mubr.bf16.gmra.mxu0 %v238
    %v346 = vpop.f32.mrf.mxu0
    %v347 = vadd.f32 %v262, %v346
    %v348 = vpop.f32.mrf.mxu0
    %v349 = vpop.f32.mrf.mxu0
    %v350 = vadd.f32 %v262, %v349
    %v351 = vpop.f32.mrf.mxu0
    %352 = vdwg.mxu0
    %353 = vst [vmem:[#allocation7] sm:$0xff] %v347
    %354 = vst [vmem:[#allocation7 + $0x8] sm:$0xff] %v350
    // Predicated region
    $region22: #{tpu_custom_call.1} parent=1 // pred_check
      _
    $region23: #{tpu_custom_call.1} parent=1 // pred_check_branch
      %356 = sbr.rel (0) target = $region25
    $region24: #{tpu_custom_call.1} parent=1 // pred_region
      %s358 = ssub.s32 256, 256
      %359 = vsyncadd [#allocation4], %s358
      %s360 = sshll.u32 [#allocation7], 4
      %s361 = int_to_ptr.vmem [resolvable:$true] %s360
      %366 = dma.vmem_to_hbm [thread:$0]  %s361, 256, %s3, [#allocation4], 128, 128, 8
    $region25: #{tpu_custom_call.1} parent=1 // pred_fallthru
      _
    // Predicated region
    $region26: #{tpu_custom_call.1} parent=1 // pred_check
      _
    $region27: #{tpu_custom_call.1} parent=1 // pred_check_branch
      %368 = sbr.rel (0) target = $region29
    $region28: #{tpu_custom_call.1} parent=1 // pred_region
      %369 = dma.done [#allocation4], 256
    $region29: #{tpu_custom_call.1} parent=1 // pred_fallthru
      _
    %370 = vsyncpa [#allocation3], 1
    %371 = vsyncpa [#allocation6], 1
    %372 = vsyncpa [#allocation4], 1

</llo_original>
